<compile_context>
chip_gen: v7x
topology: tpu7x:2x2x1
jax: 0.10.0
libtpu: 0.0.40
codegen_flags: <defaults>
</compile_context>

<pallas_src>
import jax
import jax.numpy as jnp
from jax.experimental import pallas as pl
from jax.experimental.pallas import tpu as pltpu

_LANES = 128


def _round_up(n, m):
    return ((n + m - 1) // m) * m


def _batch_tiling(batch):
    """Rows per grid step (always a multiple of 128) and number of steps."""
    if batch <= 256:
        return _round_up(batch, _LANES), 1            # single tile
    # >= 2 grid steps so the "parallel" batch axis feeds both v7x TensorCores;
    # cap at 2048 rows (3 MiB f32 x-tile, double-buffered) to stay far under
    # the VMEM limits of every TPU generation.
    tb = min(2048, _round_up(-(-batch // 2), _LANES))
    return tb, pl.cdiv(batch, tb)


# --------------------------------- kernel ------------------------------------
def _value_head_kernel(x_ref, w1_ref, b1_ref, w2_ref, b2_ref, o_ref):
    # x_ref : (TB, F)    activations, streamed per grid step
    # w1_ref: (F, H)     fc1 weight, resident (constant index_map)
    # b1_ref: (1, H)     fc1 bias (f32)
    # w2_ref: (1, H)     fc2 weight row (f32)
    # b2_ref: (1, 1)     fc2 bias, SMEM scalar
    # o_ref : (1, 1, TB) lane-dense output block

    # fc[0]: Linear(F -> H) on the MXU, f32 accumulation (input dtype kept).
    h = jnp.dot(x_ref[...], w1_ref[...], preferred_element_type=jnp.float32)
    # fc[1]: ReLU (VPU).
    h = jnp.maximum(h + b1_ref[...], 0.0)                      # (TB, H) f32
    # fc[2]: Linear(H -> 1) as VPU multiply + XLU transpose + sublane
    # reduction -> result lands directly in lane-major (1, TB) form
    # (avoids an N=1 MXU matmul and a masked last-dim-1 output store).
    p = h * w2_ref[...]                                         # (TB, H)
    v = jnp.sum(jnp.transpose(p), axis=0, keepdims=True)       # (1, TB)
    v = v + b2_ref[0, 0]
    # fc[3]: Tanh (EUP), lane-dense store.
    o_ref[...] = jnp.tanh(v).reshape(1, 1, -1).astype(o_ref.dtype)


# -------------------------------- wrapper -------------------------------------
@jax.jit
def value_head(x, params):
    B, F = x.shape
    H = params["w1"].shape[1]
    TB, nb = _batch_tiling(B)

    if nb == 1 and TB != B:
        # Tiny pad (< 128 rows) so the single block is tile aligned. Large
        # batches are never padded: the ragged last tile is handled by the
        # bounded boundary DMA and its rows are sliced off below.
        x = jnp.pad(x, ((0, TB - B), (0, 0)))

    w1 = params["w1"].astype(x.dtype)                 # bf16 x -> bf16 MXU matmul
    b1 = params["b1"].reshape(1, H).astype(jnp.float32)
    w2 = params["w2"].reshape(1, H).astype(jnp.float32)
    b2 = params["b2"].reshape(1, 1).astype(jnp.float32)

    out = pl.pallas_call(
        _value_head_kernel,
        out_shape=jax.ShapeDtypeStruct((nb, 1, TB), x.dtype),
        grid=(nb,),
        in_specs=[
            pl.BlockSpec((TB, F), lambda i: (i, 0)),            # activations
            pl.BlockSpec((F, H), lambda i: (0, 0)),             # fc1 weight (resident)
            pl.BlockSpec((1, H), lambda i: (0, 0)),             # fc1 bias
            pl.BlockSpec((1, H), lambda i: (0, 0)),             # fc2 weight row
            pl.BlockSpec(memory_space=pltpu.MemorySpace.SMEM),  # fc2 bias scalar
        ],
        out_specs=pl.BlockSpec((1, 1, TB), lambda i: (i, 0, 0)),
        compiler_params=pltpu.CompilerParams(
            dimension_semantics=("parallel",)),
    )(x, w1, b1, w2, b2)

    # (nb, 1, TB) row-major flatten is batch order; drop pad / ragged rows.
    return out.reshape(nb * TB)[:B].reshape(B, 1)


# ------------------------- plain-JAX reference (check) ------------------------
def ref_value_head(x, p):
    hi = jax.lax.Precision.HIGHEST
    h = jnp.maximum(jnp.dot(x, p["w1"], precision=hi) + p["b1"], 0.0)
    v = jnp.dot(h, p["w2"].T, precision=hi) + p["b2"]
    return jnp.tanh(v)


# ------------------------------ parameter init --------------------------------
def init_params(key, n_features=384, hidden=128):
    k1, k2, k3, k4 = jax.random.split(key, 4)
    return dict(
        # stored as (in, out) so the kernel does x @ w1 directly
        w1=(jax.random.normal(k1, (n_features, hidden), jnp.float32)
            * (n_features ** -0.5)),
        b1=jax.random.normal(k2, (1, hidden), jnp.float32) * 0.05,
        # torch Linear(128, 1).weight has shape (1, 128); keep that row layout
        w2=jax.random.normal(k3, (1, hidden), jnp.float32) * (hidden ** -0.5),
        b2=jax.random.normal(k4, (1, 1), jnp.float32) * 0.05,
    )


if __name__ == "__main__":
    F, H = 384, 128           # n_features=384, hidden=128 (module defaults)
    key = jax.random.PRNGKey(0)
    kx1, kx2, kp = jax.random.split(key, 3)
    params = init_params(kp, n_features=F, hidden=H)

    # Small shape consistent with the module: batch=2 feature vectors.
    x_small = jax.random.normal(kx1, (2, F), jnp.float32)
    out_small = jax.block_until_ready(value_head(x_small, params))
    assert out_small.shape == (2, 1), out_small.shape
    err_small = float(jnp.max(jnp.abs(out_small - ref_value_head(x_small, params))))
    assert err_small < 5e-5, f"max abs err too large: {err_small}"

    # Also exercise the multi-tile path (2 grid steps, ragged last tile).
    x_big = jax.random.normal(kx2, (300, F), jnp.float32)
    out_big = jax.block_until_ready(value_head(x_big, params))
    assert out_big.shape == (300, 1), out_big.shape
    err_big = float(jnp.max(jnp.abs(out_big - ref_value_head(x_big, params))))
    assert err_big < 5e-5, f"max abs err too large: {err_big}"

    print("KERNEL_OK")
</pallas_src>

<mosaic_0001>
module attributes {stable_mosaic.version = 11 : i64} {
  func.func @_value_head_kernel(%arg0: i32, %arg1: memref<128x384xf32, #tpu.memory_space<vmem>>, %arg2: memref<384x128xf32, #tpu.memory_space<vmem>>, %arg3: memref<1x128xf32, #tpu.memory_space<vmem>>, %arg4: memref<1x128xf32, #tpu.memory_space<vmem>>, %arg5: memref<1x1xf32, #tpu.memory_space<smem>>, %arg6: memref<1x1x128xf32, #tpu.memory_space<vmem>>) attributes {dimension_semantics = [#tpu.dimension_semantics<parallel>], iteration_bounds = array<i64: 1>, scalar_prefetch = 0 : i64, scratch_operands = 0 : i64, tpu.core_type = #tpu.core_type<tc>, window_params = [{transform_indices = @transform_0, window_bounds = array<i64: 128, 384>}, {pipeline_mode = #tpu.pipeline_mode<synchronous>, transform_indices = @transform_1, window_bounds = array<i64: 384, 128>}, {pipeline_mode = #tpu.pipeline_mode<synchronous>, transform_indices = @transform_2, window_bounds = array<i64: 1, 128>}, {pipeline_mode = #tpu.pipeline_mode<synchronous>, transform_indices = @transform_3, window_bounds = array<i64: 1, 128>}, {transform_indices = @transform_4, window_bounds = array<i64: 1, 1>}, {transform_indices = @transform_5, window_bounds = array<i64: 1, 1, 128>}]} {
    %c0 = arith.constant 0 : index
    %c0_0 = arith.constant 0 : index
    %0 = vector.load %arg1[%c0, %c0_0] : memref<128x384xf32, #tpu.memory_space<vmem>>, vector<128x384xf32>
    %c0_1 = arith.constant 0 : index
    %c0_2 = arith.constant 0 : index
    %1 = vector.load %arg2[%c0_1, %c0_2] : memref<384x128xf32, #tpu.memory_space<vmem>>, vector<384x128xf32>
    %cst = arith.constant dense<0.000000e+00> : vector<128x128xf32>
    %2 = tpu.matmul %0, %1, %cst {dimension_numbers = #tpu.dot_dimension_numbers<[1], [0], [0], [1], [0, 0, 1, 1], [], []>} : vector<128x384xf32>, vector<384x128xf32>, vector<128x128xf32> -> vector<128x128xf32>
    %c0_3 = arith.constant 0 : index
    %c0_4 = arith.constant 0 : index
    %3 = vector.load %arg3[%c0_3, %c0_4] : memref<1x128xf32, #tpu.memory_space<vmem>>, vector<1x128xf32>
    %4 = vector.broadcast %3 : vector<1x128xf32> to vector<128x128xf32>
    %5 = arith.addf %2, %4 : vector<128x128xf32>
    %cst_5 = arith.constant 0.000000e+00 : f32
    %6 = vector.broadcast %cst_5 : f32 to vector<128x128xf32>
    %7 = arith.maximumf %5, %6 : vector<128x128xf32>
    %c0_6 = arith.constant 0 : index
    %c0_7 = arith.constant 0 : index
    %8 = vector.load %arg4[%c0_6, %c0_7] : memref<1x128xf32, #tpu.memory_space<vmem>>, vector<1x128xf32>
    %9 = vector.broadcast %8 : vector<1x128xf32> to vector<128x128xf32>
    %10 = arith.mulf %7, %9 : vector<128x128xf32>
    %11 = tpu.transpose %10, [1, 0] : vector<128x128xf32> -> vector<128x128xf32>
    %cst_8 = arith.constant dense<0.000000e+00> : vector<128xf32>
    %12 = vector.multi_reduction <add>, %11, %cst_8 [0] : vector<128x128xf32> to vector<128xf32>
    %13 = vector.shape_cast %12 : vector<128xf32> to vector<1x128xf32>
    %c0_9 = arith.constant 0 : index
    %c0_10 = arith.constant 0 : index
    %14 = memref.load %arg5[%c0_9, %c0_10] : memref<1x1xf32, #tpu.memory_space<smem>>
    %15 = vector.broadcast %14 : f32 to vector<1x128xf32>
    %16 = arith.addf %13, %15 : vector<1x128xf32>
    %17 = math.tanh %16 : vector<1x128xf32>
    %18 = vector.shape_cast %17 : vector<1x128xf32> to vector<1x1x128xf32>
    %c0_11 = arith.constant 0 : index
    %c0_12 = arith.constant 0 : index
    %c0_13 = arith.constant 0 : index
    %19 = vector.load %arg6[%c0_11, %c0_12, %c0_13] : memref<1x1x128xf32, #tpu.memory_space<vmem>>, vector<1x1x128xf32>
    tpu.vector_store %arg6[%c0_11, %c0_12, %c0_13], %18 {strides = array<i32>} : memref<1x1x128xf32, #tpu.memory_space<vmem>>, vector<1x1x128xf32>,
    return
  }
  func.func @transform_0(%arg0: i32) -> (i32, i32) {
    %c0_i32 = arith.constant 0 : i32
    %c0_i32_0 = arith.constant 0 : i32
    return %arg0, %c0_i32 : i32, i32
  }
  func.func @transform_1(%arg0: i32) -> (i32, i32) {
    %c0_i32 = arith.constant 0 : i32
    %c0_i32_0 = arith.constant 0 : i32
    %c0_i32_1 = arith.constant 0 : i32
    return %c0_i32, %c0_i32_0 : i32, i32
  }
  func.func @transform_2(%arg0: i32) -> (i32, i32) {
    %c0_i32 = arith.constant 0 : i32
    %c0_i32_0 = arith.constant 0 : i32
    %c0_i32_1 = arith.constant 0 : i32
    return %c0_i32, %c0_i32_0 : i32, i32
  }
  func.func @transform_3(%arg0: i32) -> (i32, i32) {
    %c0_i32 = arith.constant 0 : i32
    %c0_i32_0 = arith.constant 0 : i32
    %c0_i32_1 = arith.constant 0 : i32
    return %c0_i32, %c0_i32_0 : i32, i32
  }
  func.func @transform_4(%arg0: i32) -> (i32, i32) {
    %c0_i32 = arith.constant 0 : i32
    %c0_i32_0 = arith.constant 0 : i32
    %c0_i32_1 = arith.constant 0 : i32
    return %c0_i32, %c0_i32_0 : i32, i32
  }
  func.func @transform_5(%arg0: i32) -> (i32, i32, i32) {
    %c0_i32 = arith.constant 0 : i32
    %c0_i32_0 = arith.constant 0 : i32
    %c0_i32_1 = arith.constant 0 : i32
    return %arg0, %c0_i32, %c0_i32_0 : i32, i32, i32
  }
}

</mosaic_0001>

<llo_original>
// kernel: value_head.1
$region0: #{value_head.1}
  #allocation0 [shape = 'u32[]', space=smem, size = 0x4, offset = 0x4, fixed_abs, tag = 'smem constant byte address 0x4 - core index']
  #allocation1 [shape = 'u32[144,128]{1,0:T(1,128)}', space=vmem, size = 0x12000, scoped, tag = 'internal scratch']
  #allocation2 [shape = 'f32[1,1]{1,0:T(1,128)S(6)}', space=smem, size = 0x200, scoped, tag = 'scoped memory for value_head.1']
  %s0 = inlined_call_operand.vmem [shape: f32[128,384], index: 0, kind: input, shape index: {}]
  %s1 = inlined_call_operand.vmem [shape: f32[384,128], index: 1, kind: input, shape index: {}]
  %s2 = inlined_call_operand.vmem [shape: f32[1,128], index: 2, kind: input, shape index: {}]
  %s3 = inlined_call_operand.vmem [shape: f32[1,128], index: 3, kind: input, shape index: {}]
  %s4 = inlined_call_operand.<no memory space> [shape: f32[1,1], index: 4, kind: input, shape index: {}]
  %s5 = inlined_call_operand.vmem [shape: f32[1,1,128], index: 5, kind: output, shape index: {}]
  %s6 = sld [smem:[#allocation0]]
  $region30: #{value_head.1} parent=0
    _
  %s8 = ssub.s32 1, %s6
  %s9 = scalar_select 0, %s8, %s6
  %10 = sst [smem:[#allocation2]] %s4
  // Predicated region
  $region2: #{value_head.1} parent=0 // pred_check
    _
  $region3: #{value_head.1} parent=0 // pred_check_branch
    %12 = sbr.rel (0) target = $region5
  $region4: #{value_head.1} parent=0 // pred_region
    _
  $region5: #{value_head.1} parent=0 // pred_fallthru
    _
  // Predicated region
  $region6: #{value_head.1} parent=0 // pred_check
    _
  $region7: #{value_head.1} parent=0 // pred_check_branch
    %14 = sbr.rel (0) target = $region9
  $region8: #{value_head.1} parent=0 // pred_region
    _
  $region9: #{value_head.1} parent=0 // pred_fallthru
    _
  // Predicated region
  $region10: #{value_head.1} parent=0 // pred_check
    _
  $region11: #{value_head.1} parent=0 // pred_check_branch
    %16 = sbr.rel (0) target = $region13
  $region12: #{value_head.1} parent=0 // pred_region
    _
  $region13: #{value_head.1} parent=0 // pred_fallthru
    _
  // Predicated region
  $region14: #{value_head.1} parent=0 // pred_check
    _
  $region15: #{value_head.1} parent=0 // pred_check_branch
    %18 = sbr.rel (0) target = $region17
  $region16: #{value_head.1} parent=0 // pred_region
    _
  $region17: #{value_head.1} parent=0 // pred_fallthru
    _
  // Predicated region
  $region18: #{value_head.1} parent=0 // pred_check
    _
  $region19: #{value_head.1} parent=0 // pred_check_branch
    %20 = sbr.rel (0) target = $region21
  $region20: #{value_head.1} parent=0 // pred_region
    _
  $region21: #{value_head.1} parent=0 // pred_fallthru
    _
  %v21 = vld [vmem:[%s0] sm:$0xff]
  %v22 = vld [vmem:[%s0 + $0x8] sm:$0xff]
  %v23 = vld [vmem:[%s0 + $0x10] sm:$0xff]
  %v24 = vld [vmem:[%s0 + $0x18] sm:$0xff]
  %v25 = vld [vmem:[%s0 + $0x20] sm:$0xff]
  %v26 = vld [vmem:[%s0 + $0x28] sm:$0xff]
  %v27 = vld [vmem:[%s0 + $0x30] sm:$0xff]
  %v28 = vld [vmem:[%s0 + $0x38] sm:$0xff]
  %v29 = vld [vmem:[%s0 + $0x40] sm:$0xff]
  %v30 = vld [vmem:[%s0 + $0x48] sm:$0xff]
  %v31 = vld [vmem:[%s0 + $0x50] sm:$0xff]
  %v32 = vld [vmem:[%s0 + $0x58] sm:$0xff]
  %v33 = vld [vmem:[%s0 + $0x60] sm:$0xff]
  %v34 = vld [vmem:[%s0 + $0x68] sm:$0xff]
  %v35 = vld [vmem:[%s0 + $0x70] sm:$0xff]
  %v36 = vld [vmem:[%s0 + $0x78] sm:$0xff]
  %v37 = vld [vmem:[%s0 + $0x80] sm:$0xff]
  %v38 = vld [vmem:[%s0 + $0x88] sm:$0xff]
  %v39 = vld [vmem:[%s0 + $0x90] sm:$0xff]
  %v40 = vld [vmem:[%s0 + $0x98] sm:$0xff]
  %v41 = vld [vmem:[%s0 + $0xa0] sm:$0xff]
  %v42 = vld [vmem:[%s0 + $0xa8] sm:$0xff]
  %v43 = vld [vmem:[%s0 + $0xb0] sm:$0xff]
  %v44 = vld [vmem:[%s0 + $0xb8] sm:$0xff]
  %v45 = vld [vmem:[%s0 + $0xc0] sm:$0xff]
  %v46 = vld [vmem:[%s0 + $0xc8] sm:$0xff]
  %v47 = vld [vmem:[%s0 + $0xd0] sm:$0xff]
  %v48 = vld [vmem:[%s0 + $0xd8] sm:$0xff]
  %v49 = vld [vmem:[%s0 + $0xe0] sm:$0xff]
  %v50 = vld [vmem:[%s0 + $0xe8] sm:$0xff]
  %v51 = vld [vmem:[%s0 + $0xf0] sm:$0xff]
  %v52 = vld [vmem:[%s0 + $0xf8] sm:$0xff]
  %v53 = vld [vmem:[%s0 + $0x100] sm:$0xff]
  %v54 = vld [vmem:[%s0 + $0x108] sm:$0xff]
  %v55 = vld [vmem:[%s0 + $0x110] sm:$0xff]
  %v56 = vld [vmem:[%s0 + $0x118] sm:$0xff]
  %v57 = vld [vmem:[%s0 + $0x120] sm:$0xff]
  %v58 = vld [vmem:[%s0 + $0x128] sm:$0xff]
  %v59 = vld [vmem:[%s0 + $0x130] sm:$0xff]
  %v60 = vld [vmem:[%s0 + $0x138] sm:$0xff]
  %v61 = vld [vmem:[%s0 + $0x140] sm:$0xff]
  %v62 = vld [vmem:[%s0 + $0x148] sm:$0xff]
  %v63 = vld [vmem:[%s0 + $0x150] sm:$0xff]
  %v64 = vld [vmem:[%s0 + $0x158] sm:$0xff]
  %v65 = vld [vmem:[%s0 + $0x160] sm:$0xff]
  %v66 = vld [vmem:[%s0 + $0x168] sm:$0xff]
  %v67 = vld [vmem:[%s0 + $0x170] sm:$0xff]
  %v68 = vld [vmem:[%s0 + $0x178] sm:$0xff]
  %v69 = vld [vmem:[%s1] sm:$0xff]
  %v70 = vld [vmem:[%s1 + $0x8] sm:$0xff]
  %v71 = vld [vmem:[%s1 + $0x10] sm:$0xff]
  %v72 = vld [vmem:[%s1 + $0x18] sm:$0xff]
  %v73 = vld [vmem:[%s1 + $0x20] sm:$0xff]
  %v74 = vld [vmem:[%s1 + $0x28] sm:$0xff]
  %v75 = vld [vmem:[%s1 + $0x30] sm:$0xff]
  %v76 = vld [vmem:[%s1 + $0x38] sm:$0xff]
  %v77 = vld [vmem:[%s1 + $0x40] sm:$0xff]
  %v78 = vld [vmem:[%s1 + $0x48] sm:$0xff]
  %v79 = vld [vmem:[%s1 + $0x50] sm:$0xff]
  %v80 = vld [vmem:[%s1 + $0x58] sm:$0xff]
  %v81 = vld [vmem:[%s1 + $0x60] sm:$0xff]
  %v82 = vld [vmem:[%s1 + $0x68] sm:$0xff]
  %v83 = vld [vmem:[%s1 + $0x70] sm:$0xff]
  %v84 = vld [vmem:[%s1 + $0x78] sm:$0xff]
  %v85 = vld [vmem:[%s1 + $0x80] sm:$0xff]
  %v86 = vld [vmem:[%s1 + $0x88] sm:$0xff]
  %v87 = vld [vmem:[%s1 + $0x90] sm:$0xff]
  %v88 = vld [vmem:[%s1 + $0x98] sm:$0xff]
  %v89 = vld [vmem:[%s1 + $0xa0] sm:$0xff]
  %v90 = vld [vmem:[%s1 + $0xa8] sm:$0xff]
  %v91 = vld [vmem:[%s1 + $0xb0] sm:$0xff]
  %v92 = vld [vmem:[%s1 + $0xb8] sm:$0xff]
  %v93 = vld [vmem:[%s1 + $0xc0] sm:$0xff]
  %v94 = vld [vmem:[%s1 + $0xc8] sm:$0xff]
  %v95 = vld [vmem:[%s1 + $0xd0] sm:$0xff]
  %v96 = vld [vmem:[%s1 + $0xd8] sm:$0xff]
  %v97 = vld [vmem:[%s1 + $0xe0] sm:$0xff]
  %v98 = vld [vmem:[%s1 + $0xe8] sm:$0xff]
  %v99 = vld [vmem:[%s1 + $0xf0] sm:$0xff]
  %v100 = vld [vmem:[%s1 + $0xf8] sm:$0xff]
  %v101 = vld [vmem:[%s1 + $0x100] sm:$0xff]
  %v102 = vld [vmem:[%s1 + $0x108] sm:$0xff]
  %v103 = vld [vmem:[%s1 + $0x110] sm:$0xff]
  %v104 = vld [vmem:[%s1 + $0x118] sm:$0xff]
  %v105 = vld [vmem:[%s1 + $0x120] sm:$0xff]
  %v106 = vld [vmem:[%s1 + $0x128] sm:$0xff]
  %v107 = vld [vmem:[%s1 + $0x130] sm:$0xff]
  %v108 = vld [vmem:[%s1 + $0x138] sm:$0xff]
  %v109 = vld [vmem:[%s1 + $0x140] sm:$0xff]
  %v110 = vld [vmem:[%s1 + $0x148] sm:$0xff]
  %v111 = vld [vmem:[%s1 + $0x150] sm:$0xff]
  %v112 = vld [vmem:[%s1 + $0x158] sm:$0xff]
  %v113 = vld [vmem:[%s1 + $0x160] sm:$0xff]
  %v114 = vld [vmem:[%s1 + $0x168] sm:$0xff]
  %v115 = vld [vmem:[%s1 + $0x170] sm:$0xff]
  %v116 = vld [vmem:[%s1 + $0x178] sm:$0xff]
  %v117 = vld [vmem:[%s2] sm:$0x1]
  %v119 = vlaneseq
  %v120 = vshrl.u32 %v119, 7
  %v121 = vsub.s32 0, %v120
  %v122 = vrot.slane %v117, %v121
  %124 = vmatprep.subr.mxu0 0.0
  %125 = vmatpush1.msra.mxu0 %v69
  %126 = vmatprep.subr.mxu0 0.0
  %127 = vmatpush1.msra.mxu0 %v70
  %128 = vmatprep.subr.mxu0 0.0
  %129 = vmatpush1.msra.mxu0 %v71
  %130 = vmatprep.subr.mxu0 0.0
  %131 = vmatpush1.msra.mxu0 %v72
  %132 = vmatprep.subr.mxu0 0.0
  %133 = vmatpush1.msra.mxu0 %v73
  %134 = vmatprep.subr.mxu0 0.0
  %135 = vmatpush1.msra.mxu0 %v74
  %136 = vmatprep.subr.mxu0 0.0
  %137 = vmatpush1.msra.mxu0 %v75
  %138 = vmatprep.subr.mxu0 0.0
  %139 = vmatpush1.msra.mxu0 %v76
  %140 = vmatprep.subr.mxu0 0.0
  %141 = vmatpush1.msra.mxu0 %v77
  %142 = vmatprep.subr.mxu0 0.0
  %143 = vmatpush1.msra.mxu0 %v78
  %144 = vmatprep.subr.mxu0 0.0
  %145 = vmatpush1.msra.mxu0 %v79
  %146 = vmatprep.subr.mxu0 0.0
  %147 = vmatpush1.msra.mxu0 %v80
  %148 = vmatprep.subr.mxu0 0.0
  %149 = vmatpush1.msra.mxu0 %v81
  %150 = vmatprep.subr.mxu0 0.0
  %151 = vmatpush1.msra.mxu0 %v82
  %152 = vmatprep.subr.mxu0 0.0
  %153 = vmatpush1.msra.mxu0 %v83
  %154 = vmatprep.subr.mxu0 0.0
  %155 = vmatpush1.msra.mxu0 %v84
  %156 = vmatprep.subr.mxu0 0.0
  %157 = vmatpush1.msra.mxu0 %v85
  %158 = vmatprep.subr.mxu0 0.0
  %159 = vmatpush1.msra.mxu0 %v86
  %160 = vmatprep.subr.mxu0 0.0
  %161 = vmatpush1.msra.mxu0 %v87
  %162 = vmatprep.subr.mxu0 0.0
  %163 = vmatpush1.msra.mxu0 %v88
  %164 = vmatprep.subr.mxu0 0.0
  %165 = vmatpush1.msra.mxu0 %v89
  %166 = vmatprep.subr.mxu0 0.0
  %167 = vmatpush1.msra.mxu0 %v90
  %168 = vmatprep.subr.mxu0 0.0
  %169 = vmatpush1.msra.mxu0 %v91
  %170 = vmatprep.subr.mxu0 0.0
  %171 = vmatpush1.msra.mxu0 %v92
  %172 = vmatprep.subr.mxu0 0.0
  %173 = vmatpush1.msra.mxu0 %v93
  %174 = vmatprep.subr.mxu0 0.0
  %175 = vmatpush1.msra.mxu0 %v94
  %176 = vmatprep.subr.mxu0 0.0
  %177 = vmatpush1.msra.mxu0 %v95
  %178 = vmatprep.subr.mxu0 0.0
  %179 = vmatpush1.msra.mxu0 %v96
  %180 = vmatprep.subr.mxu0 0.0
  %181 = vmatpush1.msra.mxu0 %v97
  %182 = vmatprep.subr.mxu0 0.0
  %183 = vmatpush1.msra.mxu0 %v98
  %184 = vmatprep.subr.mxu0 0.0
  %185 = vmatpush1.msra.mxu0 %v99
  %186 = vmatprep.subr.mxu0 0.0
  %187 = vmatpush1.msra.mxu0 %v100
  %188 = vmatprep.mubr.f32.mxu0 %v22
  %189 = vmatmul.mubr.f32.gmra.mrb[0].mxu0 %v21
  %v190 = vpop.f32.mrb[0].mxu0
  %v191 = vadd.f32 %v122, %v190
  %v192 = vpop.f32.mrb[0].mxu0
  %193 = vmatprep.mubr.f32.mxu0 %v25
  %194 = vmatmul.mubr.f32.gmra.mrb[0].mxu0 %v24
  %v195 = vpop.f32.mrb[0].mxu0
  %v196 = vadd.f32 %v122, %v195
  %v197 = vpop.f32.mrb[0].mxu0
  %198 = vmatprep.mubr.f32.mxu0 %v28
  %199 = vmatmul.mubr.f32.gmra.mrb[0].mxu0 %v27
  %v200 = vpop.f32.mrb[0].mxu0
  %v201 = vadd.f32 %v122, %v200
  %v202 = vpop.f32.mrb[0].mxu0
  %203 = vmatprep.mubr.f32.mxu0 %v31
  %204 = vmatmul.mubr.f32.gmra.mrb[0].mxu0 %v30
  %v205 = vpop.f32.mrb[0].mxu0
  %v206 = vadd.f32 %v122, %v205
  %v207 = vpop.f32.mrb[0].mxu0
  %208 = vmatprep.mubr.f32.mxu0 %v34
  %209 = vmatmul.mubr.f32.gmra.mrb[0].mxu0 %v33
  %v210 = vpop.f32.mrb[0].mxu0
  %v211 = vadd.f32 %v122, %v210
  %v212 = vpop.f32.mrb[0].mxu0
  %213 = vmatprep.mubr.f32.mxu0 %v37
  %214 = vmatmul.mubr.f32.gmra.mrb[0].mxu0 %v36
  %v215 = vpop.f32.mrb[0].mxu0
  %v216 = vadd.f32 %v122, %v215
  %v217 = vpop.f32.mrb[0].mxu0
  %218 = vmatprep.mubr.f32.mxu0 %v40
  %219 = vmatmul.mubr.f32.gmra.mrb[0].mxu0 %v39
  %v220 = vpop.f32.mrb[0].mxu0
  %v221 = vadd.f32 %v122, %v220
  %v222 = vpop.f32.mrb[0].mxu0
  %223 = vmatprep.mubr.f32.mxu0 %v43
  %224 = vmatmul.mubr.f32.gmra.mrb[0].mxu0 %v42
  %v225 = vpop.f32.mrb[0].mxu0
  %v226 = vadd.f32 %v122, %v225
  %v227 = vpop.f32.mrb[0].mxu0
  %228 = vmatprep.mubr.f32.mxu0 %v46
  %229 = vmatmul.mubr.f32.gmra.mrb[0].mxu0 %v45
  %v230 = vpop.f32.mrb[0].mxu0
  %v231 = vadd.f32 %v122, %v230
  %v232 = vpop.f32.mrb[0].mxu0
  %233 = vmatprep.mubr.f32.mxu0 %v49
  %234 = vmatmul.mubr.f32.gmra.mrb[0].mxu0 %v48
  %v235 = vpop.f32.mrb[0].mxu0
  %v236 = vadd.f32 %v122, %v235
  %v237 = vpop.f32.mrb[0].mxu0
  %238 = vmatprep.mubr.f32.mxu0 %v52
  %239 = vmatmul.mubr.f32.gmra.mrb[0].mxu0 %v51
  %v240 = vpop.f32.mrb[0].mxu0
  %v241 = vadd.f32 %v122, %v240
  %v242 = vpop.f32.mrb[0].mxu0
  %243 = vmatprep.mubr.f32.mxu0 %v55
  %244 = vmatmul.mubr.f32.gmra.mrb[0].mxu0 %v54
  %v245 = vpop.f32.mrb[0].mxu0
  %v246 = vadd.f32 %v122, %v245
  %v247 = vpop.f32.mrb[0].mxu0
  %248 = vmatprep.mubr.f32.mxu0 %v58
  %249 = vmatmul.mubr.f32.gmra.mrb[0].mxu0 %v57
  %v250 = vpop.f32.mrb[0].mxu0
  %v251 = vadd.f32 %v122, %v250
  %v252 = vpop.f32.mrb[0].mxu0
  %253 = vmatprep.mubr.f32.mxu0 %v61
  %254 = vmatmul.mubr.f32.gmra.mrb[0].mxu0 %v60
  %v255 = vpop.f32.mrb[0].mxu0
  %v256 = vadd.f32 %v122, %v255
  %v257 = vpop.f32.mrb[0].mxu0
  %258 = vmatprep.mubr.f32.mxu0 %v64
  %259 = vmatmul.mubr.f32.gmra.mrb[0].mxu0 %v63
  %v260 = vpop.f32.mrb[0].mxu0
  %v261 = vadd.f32 %v122, %v260
  %v262 = vpop.f32.mrb[0].mxu0
  %263 = vmatprep.mubr.f32.mxu0 %v67
  %264 = vmatmul.mubr.f32.gmra.mrb[0].mxu0 %v66
  %v265 = vpop.f32.mrb[0].mxu0
  %v266 = vadd.f32 %v122, %v265
  %v267 = vpop.f32.mrb[0].mxu0
  %268 = vdwg.mxu0
  %269 = vmatprep.subr.mxu0 0.0
  %270 = vmatpush1.msra.mxu0 %v101
  %271 = vmatprep.subr.mxu0 0.0
  %272 = vmatpush1.msra.mxu0 %v102
  %273 = vmatprep.subr.mxu0 0.0
  %274 = vmatpush1.msra.mxu0 %v103
  %275 = vmatprep.subr.mxu0 0.0
  %276 = vmatpush1.msra.mxu0 %v104
  %277 = vmatprep.subr.mxu0 0.0
  %278 = vmatpush1.msra.mxu0 %v105
  %279 = vmatprep.subr.mxu0 0.0
  %280 = vmatpush1.msra.mxu0 %v106
  %281 = vmatprep.subr.mxu0 0.0
  %282 = vmatpush1.msra.mxu0 %v107
  %283 = vmatprep.subr.mxu0 0.0
  %284 = vmatpush1.msra.mxu0 %v108
  %285 = vmatprep.subr.mxu0 0.0
  %286 = vmatpush1.msra.mxu0 %v109
  %287 = vmatprep.subr.mxu0 0.0
  %288 = vmatpush1.msra.mxu0 %v110
  %289 = vmatprep.subr.mxu0 0.0
  %290 = vmatpush1.msra.mxu0 %v111
  %291 = vmatprep.subr.mxu0 0.0
  %292 = vmatpush1.msra.mxu0 %v112
  %293 = vmatprep.subr.mxu0 0.0
  %294 = vmatpush1.msra.mxu0 %v113
  %295 = vmatprep.subr.mxu0 0.0
  %296 = vmatpush1.msra.mxu0 %v114
  %297 = vmatprep.subr.mxu0 0.0
  %298 = vmatpush1.msra.mxu0 %v115
  %299 = vmatprep.subr.mxu0 0.0
  %300 = vmatpush1.msra.mxu0 %v116
  %301 = vmatprep.subr.mxu0 0.0
  %302 = vmatpush1.msra.mxu0 0.0
  %303 = vmatprep.subr.mxu0 0.0
  %304 = vmatpush1.msra.mxu0 0.0
  %305 = vmatprep.subr.mxu0 0.0
  %306 = vmatpush1.msra.mxu0 0.0
  %307 = vmatprep.subr.mxu0 0.0
  %308 = vmatpush1.msra.mxu0 0.0
  %309 = vmatprep.subr.mxu0 0.0
  %310 = vmatpush1.msra.mxu0 0.0
  %311 = vmatprep.subr.mxu0 0.0
  %312 = vmatpush1.msra.mxu0 0.0
  %313 = vmatprep.subr.mxu0 0.0
  %314 = vmatpush1.msra.mxu0 0.0
  %315 = vmatprep.subr.mxu0 0.0
  %316 = vmatpush1.msra.mxu0 0.0
  %317 = vmatprep.subr.mxu0 0.0
  %318 = vmatpush1.msra.mxu0 0.0
  %319 = vmatprep.subr.mxu0 0.0
  %320 = vmatpush1.msra.mxu0 0.0
  %321 = vmatprep.subr.mxu0 0.0
  %322 = vmatpush1.msra.mxu0 0.0
  %323 = vmatprep.subr.mxu0 0.0
  %324 = vmatpush1.msra.mxu0 0.0
  %325 = vmatprep.subr.mxu0 0.0
  %326 = vmatpush1.msra.mxu0 0.0
  %327 = vmatprep.subr.mxu0 0.0
  %328 = vmatpush1.msra.mxu0 0.0
  %329 = vmatprep.subr.mxu0 0.0
  %330 = vmatpush1.msra.mxu0 0.0
  %331 = vmatprep.subr.mxu0 0.0
  %332 = vmatpush1.msra.mxu0 0.0
  %333 = vmatprep.mubr.f32.mxu0 0.0
  %334 = vmatmul.mubr.f32.gmra.mrb[0].mxu0 %v23
  %v335 = vpop.f32.mrb[0].mxu0
  %v336 = vadd.f32 %v191, %v335
  %v337 = vpop.f32.mrb[0].mxu0
  %338 = vmatprep.mubr.f32.mxu0 0.0
  %339 = vmatmul.mubr.f32.gmra.mrb[0].mxu0 %v26
  %v340 = vpop.f32.mrb[0].mxu0
  %v341 = vadd.f32 %v196, %v340
  %v342 = vpop.f32.mrb[0].mxu0
  %343 = vmatprep.mubr.f32.mxu0 0.0
  %344 = vmatmul.mubr.f32.gmra.mrb[0].mxu0 %v29
  %v345 = vpop.f32.mrb[0].mxu0
  %v346 = vadd.f32 %v201, %v345
  %v347 = vpop.f32.mrb[0].mxu0
  %348 = vmatprep.mubr.f32.mxu0 0.0
  %349 = vmatmul.mubr.f32.gmra.mrb[0].mxu0 %v32
  %v350 = vpop.f32.mrb[0].mxu0
  %v351 = vadd.f32 %v206, %v350
  %v352 = vpop.f32.mrb[0].mxu0
  %353 = vmatprep.mubr.f32.mxu0 0.0
  %354 = vmatmul.mubr.f32.gmra.mrb[0].mxu0 %v35
  %v355 = vpop.f32.mrb[0].mxu0
  %v356 = vadd.f32 %v211, %v355
  %v357 = vpop.f32.mrb[0].mxu0
  %358 = vmatprep.mubr.f32.mxu0 0.0
  %359 = vmatmul.mubr.f32.gmra.mrb[0].mxu0 %v38
  %v360 = vpop.f32.mrb[0].mxu0
  %v361 = vadd.f32 %v216, %v360
  %v362 = vpop.f32.mrb[0].mxu0
  %363 = vmatprep.mubr.f32.mxu0 0.0
  %364 = vmatmul.mubr.f32.gmra.mrb[0].mxu0 %v41
  %v365 = vpop.f32.mrb[0].mxu0
  %v366 = vadd.f32 %v221, %v365
  %v367 = vpop.f32.mrb[0].mxu0
  %368 = vmatprep.mubr.f32.mxu0 0.0
  %369 = vmatmul.mubr.f32.gmra.mrb[0].mxu0 %v44
  %v370 = vpop.f32.mrb[0].mxu0
  %v371 = vadd.f32 %v226, %v370
  %v372 = vpop.f32.mrb[0].mxu0
  %373 = vmatprep.mubr.f32.mxu0 0.0
  %374 = vmatmul.mubr.f32.gmra.mrb[0].mxu0 %v47
  %v375 = vpop.f32.mrb[0].mxu0
  %v376 = vadd.f32 %v231, %v375
  %v377 = vpop.f32.mrb[0].mxu0
  %378 = vmatprep.mubr.f32.mxu0 0.0
  %379 = vmatmul.mubr.f32.gmra.mrb[0].mxu0 %v50
  %v380 = vpop.f32.mrb[0].mxu0
  %v381 = vadd.f32 %v236, %v380
  %v382 = vpop.f32.mrb[0].mxu0
  %383 = vmatprep.mubr.f32.mxu0 0.0
  %384 = vmatmul.mubr.f32.gmra.mrb[0].mxu0 %v53
  %v385 = vpop.f32.mrb[0].mxu0
  %v386 = vadd.f32 %v241, %v385
  %v387 = vpop.f32.mrb[0].mxu0
  %388 = vmatprep.mubr.f32.mxu0 0.0
  %389 = vmatmul.mubr.f32.gmra.mrb[0].mxu0 %v56
  %v390 = vpop.f32.mrb[0].mxu0
  %v391 = vadd.f32 %v246, %v390
  %v392 = vpop.f32.mrb[0].mxu0
  %393 = vmatprep.mubr.f32.mxu0 0.0
  %394 = vmatmul.mubr.f32.gmra.mrb[0].mxu0 %v59
  %v395 = vpop.f32.mrb[0].mxu0
  %v396 = vadd.f32 %v251, %v395
  %v397 = vpop.f32.mrb[0].mxu0
  %398 = vmatprep.mubr.f32.mxu0 0.0
  %399 = vmatmul.mubr.f32.gmra.mrb[0].mxu0 %v62
  %v400 = vpop.f32.mrb[0].mxu0
  %v401 = vadd.f32 %v256, %v400
  %v402 = vpop.f32.mrb[0].mxu0
  %403 = vmatprep.mubr.f32.mxu0 0.0
  %404 = vmatmul.mubr.f32.gmra.mrb[0].mxu0 %v65
  %v405 = vpop.f32.mrb[0].mxu0
  %v406 = vadd.f32 %v261, %v405
  %v407 = vpop.f32.mrb[0].mxu0
  %408 = vmatprep.mubr.f32.mxu0 0.0
  %409 = vmatmul.mubr.f32.gmra.mrb[0].mxu0 %v68
  %v410 = vpop.f32.mrb[0].mxu0
  %v411 = vadd.f32 %v266, %v410
  %v412 = vpop.f32.mrb[0].mxu0
  %413 = vdwg.mxu0
  %v414 = vmax.f32 %v336, 0.0
  %v415 = vmax.f32 %v341, 0.0
  %v416 = vmax.f32 %v346, 0.0
  %v417 = vmax.f32 %v351, 0.0
  %v418 = vmax.f32 %v356, 0.0
  %v419 = vmax.f32 %v361, 0.0
  %v420 = vmax.f32 %v366, 0.0
  %v421 = vmax.f32 %v371, 0.0
  %v422 = vmax.f32 %v376, 0.0
  %v423 = vmax.f32 %v381, 0.0
  %v424 = vmax.f32 %v386, 0.0
  %v425 = vmax.f32 %v391, 0.0
  %v426 = vmax.f32 %v396, 0.0
  %v427 = vmax.f32 %v401, 0.0
  %v428 = vmax.f32 %v406, 0.0
  %v429 = vmax.f32 %v411, 0.0
  %v430 = vld [vmem:[%s3] sm:$0x1]
  %v432 = vlaneseq
  %v433 = vshrl.u32 %v432, 7
  %v434 = vsub.s32 0, %v433
  %v435 = vrot.slane %v430, %v434
  %v437 = vmul.f32 %v414, %v435
  %v438 = vmul.f32 %v415, %v435
  %v439 = vmul.f32 %v416, %v435
  %v440 = vmul.f32 %v417, %v435
  %v441 = vmul.f32 %v418, %v435
  %v442 = vmul.f32 %v419, %v435
  %v443 = vmul.f32 %v420, %v435
  %v444 = vmul.f32 %v421, %v435
  %v445 = vmul.f32 %v422, %v435
  %v446 = vmul.f32 %v423, %v435
  %v447 = vmul.f32 %v424, %v435
  %v448 = vmul.f32 %v425, %v435
  %v449 = vmul.f32 %v426, %v435
  %v450 = vmul.f32 %v427, %v435
  %v451 = vmul.f32 %v428, %v435
  %v452 = vmul.f32 %v429, %v435
  %453 = vxpose.xlu0.b32.start [1/16] %v437, 128
  %454 = vxpose.xlu0.b32.cont [2/16] %v438, 128
  %455 = vxpose.xlu0.b32.cont [3/16] %v439, 128
  %456 = vxpose.xlu0.b32.cont [4/16] %v440, 128
  %457 = vxpose.xlu0.b32.cont [5/16] %v441, 128
  %458 = vxpose.xlu0.b32.cont [6/16] %v442, 128
  %459 = vxpose.xlu0.b32.cont [7/16] %v443, 128
  %460 = vxpose.xlu0.b32.cont [8/16] %v444, 128
  %461 = vxpose.xlu0.b32.cont [9/16] %v445, 128
  %462 = vxpose.xlu0.b32.cont [10/16] %v446, 128
  %463 = vxpose.xlu0.b32.cont [11/16] %v447, 128
  %464 = vxpose.xlu0.b32.cont [12/16] %v448, 128
  %465 = vxpose.xlu0.b32.cont [13/16] %v449, 128
  %466 = vxpose.xlu0.b32.cont [14/16] %v450, 128
  %467 = vxpose.xlu0.b32.cont [15/16] %v451, 128
  %468 = vxpose.xlu0.b32.end [16/16] %v452, 128
  %v469 = vpop.trf.xlu0
  %v470 = vpop.trf.xlu0
  %v471 = vpop.trf.xlu0
  %v472 = vpop.trf.xlu0
  %v473 = vpop.trf.xlu0
  %v474 = vpop.trf.xlu0
  %v475 = vpop.trf.xlu0
  %v476 = vpop.trf.xlu0
  %v477 = vpop.trf.xlu0
  %v478 = vpop.trf.xlu0
  %v479 = vpop.trf.xlu0
  %v480 = vpop.trf.xlu0
  %v481 = vpop.trf.xlu0
  %v482 = vpop.trf.xlu0
  %v483 = vpop.trf.xlu0
  %v484 = vpop.trf.xlu0
  %v485 = vadd.f32 %v469, %v470
  %v486 = vadd.f32 %v485, %v471
  %v487 = vadd.f32 %v486, %v472
  %v488 = vadd.f32 %v487, %v473
  %v489 = vadd.f32 %v488, %v474
  %v490 = vadd.f32 %v489, %v475
  %v491 = vadd.f32 %v490, %v476
  %v492 = vadd.f32 %v491, %v477
  %v493 = vadd.f32 %v492, %v478
  %v494 = vadd.f32 %v493, %v479
  %v495 = vadd.f32 %v494, %v480
  %v496 = vadd.f32 %v495, %v481
  %v497 = vadd.f32 %v496, %v482
  %v498 = vadd.f32 %v497, %v483
  %v499 = vadd.f32 %v498, %v484
  %v500 = vrot.slane %v499, 4
  %v501 = vadd.f32 %v499, %v500
  %v502 = vrot.slane %v501, 2
  %v503 = vadd.f32 %v501, %v502
  %v504 = vrot.slane %v503, 1
  %v505 = vadd.f32 %v503, %v504
  %s506 = sld [smem:[#allocation2]]
  %v507 = vstv %s506
  %v508 = vadd.f32 %v505, %v507
  %v509 = vtanh.pop %v508
  %510 = vst [vmem:[%s5] sm:$0x1] %v509
  // Predicated region
  $region22: #{value_head.1} parent=0 // pred_check
    _
  $region23: #{value_head.1} parent=0 // pred_check_branch
    %512 = sbr.rel (0) target = $region25
  $region24: #{value_head.1} parent=0 // pred_region
    _
  $region25: #{value_head.1} parent=0 // pred_fallthru
    _
  // Predicated region
  $region26: #{value_head.1} parent=0 // pred_check
    _
  $region27: #{value_head.1} parent=0 // pred_check_branch
    %514 = sbr.rel (0) target = $region29
  $region28: #{value_head.1} parent=0 // pred_region
    _
  $region29: #{value_head.1} parent=0 // pred_fallthru
    _

</llo_original>
